<compile_context>
chip_gen: v7x
topology: tpu7x:2x2x1
jax: 0.10.0
libtpu: 0.0.40
codegen_flags: <defaults>
</compile_context>

<pallas_src>
import functools

import jax
import jax.numpy as jnp
from jax.experimental import pallas as pl
from jax.experimental.pallas import tpu as pltpu


def _round_up(x, m):
    return (x + m - 1) // m * m


# --------------------------------------------------------------------------- #
# Kernels
# --------------------------------------------------------------------------- #
def _mlp_kernel(x_ref, w1_ref, b1_ref, w2_ref, b2_ref, o_ref):
    """Fully-resident path: one batch tile per grid step."""
    x = x_ref[...].astype(jnp.bfloat16)                     # cast in-kernel
    h = jnp.dot(x, w1_ref[...], preferred_element_type=jnp.float32)
    h = jnp.maximum(h + b1_ref[...], 0.0)                   # ReLU (+fp32 bias)
    # Dropout == identity (eval mode).
    out = jnp.dot(h.astype(jnp.bfloat16), w2_ref[...],
                  preferred_element_type=jnp.float32)
    o_ref[...] = (out + b2_ref[...]).astype(o_ref.dtype)    # bf16 writeback


def _mlp_kernel_ktiled(x_ref, w1_ref, b1_ref, w2_ref, b2_ref, o_ref, acc_ref):
    """K-tiled path: reduction over in_dim with fp32 accumulator scratch."""
    k = pl.program_id(1)

    @pl.when(k == 0)
    def _():
        acc_ref[...] = jnp.zeros_like(acc_ref)

    acc_ref[...] += jnp.dot(x_ref[...].astype(jnp.bfloat16), w1_ref[...],
                            preferred_element_type=jnp.float32)

    @pl.when(k == pl.num_programs(1) - 1)
    def _():
        h = jnp.maximum(acc_ref[...] + b1_ref[...], 0.0)    # ReLU
        out = jnp.dot(h.astype(jnp.bfloat16), w2_ref[...],
                      preferred_element_type=jnp.float32)
        o_ref[...] = (out + b2_ref[...]).astype(o_ref.dtype)


# --------------------------------------------------------------------------- #
# One-time parameter preparation (bf16 cast + lane padding), done at init time
# so the per-call forward never re-reads/re-writes the weights.
# --------------------------------------------------------------------------- #
def prepare_params(w1, b1, w2, b2, *, vmem_budget_bytes=32 << 20, k_tile=512):
    """w1:(in,hid) b1:(hid,) w2:(hid,out) b2:(out,) -> padded bf16/fp32 params."""
    in_dim, hid = w1.shape
    out_dim = int(w2.shape[1])
    hid_pad = _round_up(hid, 128)
    out_pad = _round_up(out_dim, 128)

    w1p = jnp.pad(w1, ((0, 0), (0, hid_pad - hid))).astype(jnp.bfloat16)
    b1p = jnp.pad(jnp.reshape(b1, (1, hid)),
                  ((0, 0), (0, hid_pad - hid))).astype(jnp.float32)
    w2p = jnp.pad(w2, ((0, hid_pad - hid), (0, out_pad - out_dim))
                  ).astype(jnp.bfloat16)
    b2p = jnp.pad(jnp.reshape(b2, (1, out_dim)),
                  ((0, 0), (0, out_pad - out_dim))).astype(jnp.float32)

    # Resident footprint if everything (incl. default double-buffering of
    # constant-index blocks) lives in VMEM; conservative across v5e/v6e/v7x.
    resident = 2 * (w1p.size * 2 + w2p.size * 2 + b1p.size * 4 + b2p.size * 4)
    chosen_k = None
    if resident > vmem_budget_bytes // 2:
        chosen_k = int(k_tile)                   # multiple of 128 (lane dim)
        in_dim_pad = _round_up(in_dim, chosen_k)
        w1p = jnp.pad(w1p, ((0, in_dim_pad - in_dim), (0, 0)))
    return w1p, b1p, w2p, b2p, out_dim, chosen_k


# --------------------------------------------------------------------------- #
# Fused forward
# --------------------------------------------------------------------------- #
@functools.partial(jax.jit, static_argnames=("out_dim", "k_tile", "block_m"))
def simple_classifier_fwd(x, w1, b1, w2, b2, *, out_dim, k_tile=None,
                          block_m=512):
    """x:(B,in) fp32, prepared params from prepare_params -> (B,out) fp32."""
    B, in_dim = x.shape
    in_dim_pad, hid_pad = w1.shape
    out_pad = w2.shape[1]

    # ---- Batch tiling: ragged tail, >=2 grid steps whenever possible -------
    block_m = max(16, _round_up(block_m, 16))
    tm = min(block_m, _round_up(pl.cdiv(B, 2), 16))
    if tm >= B:
        tm = B                      # single block == full dim (always legal)
    num_m = pl.cdiv(B, tm)

    # ---- Cost / VMEM accounting --------------------------------------------
    flops = 2 * B * (in_dim_pad * hid_pad + hid_pad * out_pad)
    bytes_accessed = (B * in_dim * 4 + w1.size * 2 + w2.size * 2
                      + b1.size * 4 + b2.size * 4 + B * out_pad * 2)
    cost = pl.CostEstimate(flops=int(flops), transcendentals=0,
                           bytes_accessed=int(bytes_accessed))

    kx = in_dim if k_tile is None else k_tile
    vmem_est = (2 * tm * kx * 4                      # double-buffered x tiles
                + 2 * tm * out_pad * 2               # double-buffered out tiles
                + 2 * (kx * hid_pad * 2 + hid_pad * out_pad * 2
                       + hid_pad * 4 + out_pad * 4)  # resident weights/biases
                + 3 * tm * hid_pad * 4)              # h / acc intermediates
    vmem_limit = int(min(max(2 * vmem_est, 32 << 20), 48 << 20))

    compiler_params = pltpu.CompilerParams(
        dimension_semantics=(("parallel",) if k_tile is None
                             else ("parallel", "arbitrary")),
        vmem_limit_bytes=vmem_limit)

    if k_tile is None:
        out_padded = pl.pallas_call(
            _mlp_kernel,
            out_shape=jax.ShapeDtypeStruct((B, out_pad), jnp.bfloat16),
            grid_spec=pltpu.PrefetchScalarGridSpec(
                num_scalar_prefetch=0,
                grid=(num_m,),
                in_specs=[
                    pl.BlockSpec((tm, in_dim), lambda i: (i, 0)),         # x
                    pl.BlockSpec((in_dim_pad, hid_pad), lambda i: (0, 0)),  # w1
                    pl.BlockSpec((1, hid_pad), lambda i: (0, 0)),         # b1
                    pl.BlockSpec((hid_pad, out_pad), lambda i: (0, 0)),   # w2
                    pl.BlockSpec((1, out_pad), lambda i: (0, 0)),         # b2
                ],
                out_specs=pl.BlockSpec((tm, out_pad), lambda i: (i, 0)),
            ),
            compiler_params=compiler_params,
            cost_estimate=cost,
        )(x, w1, b1, w2, b2)
    else:
        if in_dim_pad != in_dim:
            # Only on the huge-weights path; zero cols meet zero w1 rows.
            x = jnp.pad(x, ((0, 0), (0, in_dim_pad - in_dim)))
        num_k = in_dim_pad // k_tile
        out_padded = pl.pallas_call(
            _mlp_kernel_ktiled,
            out_shape=jax.ShapeDtypeStruct((B, out_pad), jnp.bfloat16),
            grid_spec=pltpu.PrefetchScalarGridSpec(
                num_scalar_prefetch=0,
                grid=(num_m, num_k),
                in_specs=[
                    pl.BlockSpec((tm, k_tile), lambda i, k: (i, k)),      # x
                    pl.BlockSpec((k_tile, hid_pad), lambda i, k: (k, 0)),  # w1
                    pl.BlockSpec((1, hid_pad), lambda i, k: (0, 0)),      # b1
                    pl.BlockSpec((hid_pad, out_pad), lambda i, k: (0, 0)),  # w2
                    pl.BlockSpec((1, out_pad), lambda i, k: (0, 0)),      # b2
                ],
                out_specs=pl.BlockSpec((tm, out_pad), lambda i, k: (i, 0)),
                scratch_shapes=[pltpu.VMEM((tm, hid_pad), jnp.float32)],
            ),
            compiler_params=compiler_params,
            cost_estimate=cost,
        )(x, w1, b1, w2, b2)

    # Slice off lane padding / ragged rows; upcast bf16 logits to fp32.
    return out_padded[:B, :out_dim].astype(jnp.float32)


# --------------------------------------------------------------------------- #
# PyTorch-Linear-style init (weights stored pre-transposed: (in, out))
# --------------------------------------------------------------------------- #
def init_params(key, in_dim, hid_dim, out_dim):
    k1, k2, k3, k4 = jax.random.split(key, 4)
    bound1 = 1.0 / jnp.sqrt(in_dim)
    bound2 = 1.0 / jnp.sqrt(hid_dim)
    w1 = jax.random.uniform(k1, (in_dim, hid_dim), jnp.float32, -bound1, bound1)
    b1 = jax.random.uniform(k2, (hid_dim,), jnp.float32, -bound1, bound1)
    w2 = jax.random.uniform(k3, (hid_dim, out_dim), jnp.float32, -bound2, bound2)
    b2 = jax.random.uniform(k4, (out_dim,), jnp.float32, -bound2, bound2)
    return w1, b1, w2, b2


if __name__ == "__main__":
    key = jax.random.PRNGKey(0)
    kx, kp = jax.random.split(key)

    # --- Test 1: small shapes, fully-resident path --------------------------
    B, in_dim, hid_dim, out_dim = 8, 32, 64, 16
    x = jax.random.normal(kx, (B, in_dim), jnp.float32)
    w1, b1, w2, b2 = init_params(kp, in_dim, hid_dim, out_dim)

    pw1, pb1, pw2, pb2, odim, ktile = prepare_params(w1, b1, w2, b2)
    logits = simple_classifier_fwd(x, pw1, pb1, pw2, pb2,
                                   out_dim=odim, k_tile=ktile)
    jax.block_until_ready(logits)

    ref = jnp.maximum(x @ w1 + b1, 0.0) @ w2 + b2
    assert logits.shape == (B, out_dim)
    assert jnp.allclose(logits, ref, atol=5e-2, rtol=5e-2), (
        jnp.max(jnp.abs(logits - ref)))

    # --- Test 2: force the K-tiled (reduction-axis) path + ragged batch tail -
    B2, in2, hid2, out2 = 24, 256, 96, 10
    kx2, kp2 = jax.random.split(kp)
    x2 = jax.random.normal(kx2, (B2, in2), jnp.float32)
    w1b, b1b, w2b, b2b = init_params(kp2, in2, hid2, out2)

    pw1b, pb1b, pw2b, pb2b, odim2, ktile2 = prepare_params(
        w1b, b1b, w2b, b2b, vmem_budget_bytes=1, k_tile=128)  # force K path
    assert ktile2 == 128
    logits2 = simple_classifier_fwd(x2, pw1b, pb1b, pw2b, pb2b,
                                    out_dim=odim2, k_tile=ktile2)
    jax.block_until_ready(logits2)

    ref2 = jnp.maximum(x2 @ w1b + b1b, 0.0) @ w2b + b2b
    assert logits2.shape == (B2, out2)
    assert jnp.allclose(logits2, ref2, atol=5e-2, rtol=5e-2), (
        jnp.max(jnp.abs(logits2 - ref2)))

    print("KERNEL_OK")
</pallas_src>

<mosaic_0001>
module attributes {stable_mosaic.version = 11 : i64} {
  func.func @_mlp_kernel(%arg0: i32, %arg1: memref<8x32xf32, #tpu.memory_space<vmem>>, %arg2: memref<32x128xbf16, #tpu.memory_space<vmem>>, %arg3: memref<1x128xf32, #tpu.memory_space<vmem>>, %arg4: memref<128x128xbf16, #tpu.memory_space<vmem>>, %arg5: memref<1x128xf32, #tpu.memory_space<vmem>>, %arg6: memref<8x128xbf16, #tpu.memory_space<vmem>>) attributes {dimension_semantics = [#tpu.dimension_semantics<parallel>], iteration_bounds = array<i64: 1>, scalar_prefetch = 0 : i64, scratch_operands = 0 : i64, tpu.core_type = #tpu.core_type<tc>, window_params = [{transform_indices = @transform_0, window_bounds = array<i64: 8, 32>}, {pipeline_mode = #tpu.pipeline_mode<synchronous>, transform_indices = @transform_1, window_bounds = array<i64: 32, 128>}, {pipeline_mode = #tpu.pipeline_mode<synchronous>, transform_indices = @transform_2, window_bounds = array<i64: 1, 128>}, {pipeline_mode = #tpu.pipeline_mode<synchronous>, transform_indices = @transform_3, window_bounds = array<i64: 128, 128>}, {pipeline_mode = #tpu.pipeline_mode<synchronous>, transform_indices = @transform_4, window_bounds = array<i64: 1, 128>}, {transform_indices = @transform_5, window_bounds = array<i64: 8, 128>}]} {
    %c0 = arith.constant 0 : index
    %c0_0 = arith.constant 0 : index
    %0 = vector.load %arg1[%c0, %c0_0] : memref<8x32xf32, #tpu.memory_space<vmem>>, vector<8x32xf32>
    %1 = arith.truncf %0 : vector<8x32xf32> to vector<8x32xbf16>
    %c0_1 = arith.constant 0 : index
    %c0_2 = arith.constant 0 : index
    %2 = vector.load %arg2[%c0_1, %c0_2] : memref<32x128xbf16, #tpu.memory_space<vmem>>, vector<32x128xbf16>
    %cst = arith.constant dense<0.000000e+00> : vector<8x128xf32>
    %3 = tpu.matmul %1, %2, %cst {dimension_numbers = #tpu.dot_dimension_numbers<[1], [0], [0], [1], [0, 0, 1, 1], [], []>} : vector<8x32xbf16>, vector<32x128xbf16>, vector<8x128xf32> -> vector<8x128xf32>
    %c0_3 = arith.constant 0 : index
    %c0_4 = arith.constant 0 : index
    %4 = vector.load %arg3[%c0_3, %c0_4] : memref<1x128xf32, #tpu.memory_space<vmem>>, vector<1x128xf32>
    %5 = vector.broadcast %4 : vector<1x128xf32> to vector<8x128xf32>
    %6 = arith.addf %3, %5 : vector<8x128xf32>
    %cst_5 = arith.constant 0.000000e+00 : f32
    %7 = vector.broadcast %cst_5 : f32 to vector<8x128xf32>
    %8 = arith.maximumf %6, %7 : vector<8x128xf32>
    %9 = arith.truncf %8 : vector<8x128xf32> to vector<8x128xbf16>
    %c0_6 = arith.constant 0 : index
    %c0_7 = arith.constant 0 : index
    %10 = vector.load %arg4[%c0_6, %c0_7] : memref<128x128xbf16, #tpu.memory_space<vmem>>, vector<128x128xbf16>
    %cst_8 = arith.constant dense<0.000000e+00> : vector<8x128xf32>
    %11 = tpu.matmul %9, %10, %cst_8 {dimension_numbers = #tpu.dot_dimension_numbers<[1], [0], [0], [1], [0, 0, 1, 1], [], []>} : vector<8x128xbf16>, vector<128x128xbf16>, vector<8x128xf32> -> vector<8x128xf32>
    %c0_9 = arith.constant 0 : index
    %c0_10 = arith.constant 0 : index
    %12 = vector.load %arg5[%c0_9, %c0_10] : memref<1x128xf32, #tpu.memory_space<vmem>>, vector<1x128xf32>
    %13 = vector.broadcast %12 : vector<1x128xf32> to vector<8x128xf32>
    %14 = arith.addf %11, %13 : vector<8x128xf32>
    %15 = arith.truncf %14 : vector<8x128xf32> to vector<8x128xbf16>
    %c0_11 = arith.constant 0 : index
    %c0_12 = arith.constant 0 : index
    %16 = vector.load %arg6[%c0_11, %c0_12] : memref<8x128xbf16, #tpu.memory_space<vmem>>, vector<8x128xbf16>
    tpu.vector_store %arg6[%c0_11, %c0_12], %15 {strides = array<i32>} : memref<8x128xbf16, #tpu.memory_space<vmem>>, vector<8x128xbf16>,
    return
  }
  func.func @transform_0(%arg0: i32) -> (i32, i32) {
    %c0_i32 = arith.constant 0 : i32
    %c0_i32_0 = arith.constant 0 : i32
    return %arg0, %c0_i32 : i32, i32
  }
  func.func @transform_1(%arg0: i32) -> (i32, i32) {
    %c0_i32 = arith.constant 0 : i32
    %c0_i32_0 = arith.constant 0 : i32
    %c0_i32_1 = arith.constant 0 : i32
    return %c0_i32, %c0_i32_0 : i32, i32
  }
  func.func @transform_2(%arg0: i32) -> (i32, i32) {
    %c0_i32 = arith.constant 0 : i32
    %c0_i32_0 = arith.constant 0 : i32
    %c0_i32_1 = arith.constant 0 : i32
    return %c0_i32, %c0_i32_0 : i32, i32
  }
  func.func @transform_3(%arg0: i32) -> (i32, i32) {
    %c0_i32 = arith.constant 0 : i32
    %c0_i32_0 = arith.constant 0 : i32
    %c0_i32_1 = arith.constant 0 : i32
    return %c0_i32, %c0_i32_0 : i32, i32
  }
  func.func @transform_4(%arg0: i32) -> (i32, i32) {
    %c0_i32 = arith.constant 0 : i32
    %c0_i32_0 = arith.constant 0 : i32
    %c0_i32_1 = arith.constant 0 : i32
    return %c0_i32, %c0_i32_0 : i32, i32
  }
  func.func @transform_5(%arg0: i32) -> (i32, i32) {
    %c0_i32 = arith.constant 0 : i32
    %c0_i32_0 = arith.constant 0 : i32
    return %arg0, %c0_i32 : i32, i32
  }
}

</mosaic_0001>

<llo_original>
// kernel: simple_classifier_fwd.1
$region0: #{simple_classifier_fwd.1}
  #allocation0 [shape = 'u32[]', space=smem, size = 0x4, offset = 0x4, fixed_abs, tag = 'smem constant byte address 0x4 - core index']
  #allocation1 [shape = 'u32[144,128]{1,0:T(1,128)}', space=vmem, size = 0x12000, scoped, tag = 'internal scratch']
  %s0 = inlined_call_operand.hbm [shape: f32[8,32], index: 0, kind: input, shape index: {}]
  %s1 = inlined_call_operand.hbm [shape: bf16[32,128], index: 1, kind: input, shape index: {}]
  %s2 = inlined_call_operand.vmem [shape: f32[1,128], index: 2, kind: input, shape index: {}]
  %s3 = inlined_call_operand.hbm [shape: bf16[128,128], index: 3, kind: input, shape index: {}]
  %s4 = inlined_call_operand.vmem [shape: f32[1,128], index: 4, kind: input, shape index: {}]
  %s5 = inlined_call_operand.vmem [shape: bf16[8,128], index: 5, kind: output, shape index: {}]
  %s6 = sld [smem:[#allocation0]]
  $region42: #{simple_classifier_fwd.1} parent=0
    _
  %s8 = ssub.s32 1, %s6
  %s9 = scalar_select 0, %s8, %s6
  $region1: #{simple_classifier_fwd.1} parent=0
    #allocation2 [shape = 'u8[4096]{0}', space=vmem, size = 0x1000, scoped, tag = 'input window, operand 0, single buffered']
    #allocation3 [shape = 's32[1]{0}', space=sflag, size = 0x4, scoped, tag = 'scoped memory for simple_classifier_fwd.1']
    #allocation4 [shape = 'u8[8192]{0}', space=vmem, size = 0x2000, scoped, tag = 'input window, operand 1, single buffered']
    #allocation5 [shape = 's32[1]{0}', space=sflag, size = 0x4, scoped, tag = 'scoped memory for simple_classifier_fwd.1']
    #allocation6 [shape = 'u8[32768]{0}', space=vmem, size = 0x8000, scoped, tag = 'input window, operand 3, single buffered']
    %10 = vsyncpa [#allocation3], 0
    %11 = vsyncpa [#allocation5], 0
    // Predicated region
    $region2: #{simple_classifier_fwd.1} parent=1 // pred_check
      _
    $region3: #{simple_classifier_fwd.1} parent=1 // pred_check_branch
      %13 = sbr.rel (0) target = $region5
    $region4: #{simple_classifier_fwd.1} parent=1 // pred_region
      %s15 = ssub.s32 128, 128
      %16 = vsyncadd [#allocation3], %s15
      %s18 = sshll.u32 [#allocation2], 4
      %s19 = int_to_ptr.vmem [resolvable:$true] %s18
      %21 = dma.hbm_to_vmem [thread:$0]  %s0, 128, %s19, [#allocation3]
    $region5: #{simple_classifier_fwd.1} parent=1 // pred_fallthru
      _
    // Predicated region
    $region6: #{simple_classifier_fwd.1} parent=1 // pred_check
      _
    $region7: #{simple_classifier_fwd.1} parent=1 // pred_check_branch
      %23 = sbr.rel (0) target = $region9
    $region8: #{simple_classifier_fwd.1} parent=1 // pred_region
      %s25 = ssub.s32 256, 256
      %26 = vsyncadd [#allocation5], %s25
      %s27 = sshll.u32 [#allocation4], 4
      %s28 = int_to_ptr.vmem [resolvable:$true] %s27
      %33 = dma.hbm_to_vmem [thread:$0]  %s1, 256, %s28, [#allocation5], 64, 64, 4
    $region9: #{simple_classifier_fwd.1} parent=1 // pred_fallthru
      _
    // Predicated region
    $region10: #{simple_classifier_fwd.1} parent=1 // pred_check
      _
    $region11: #{simple_classifier_fwd.1} parent=1 // pred_check_branch
      %35 = sbr.rel (0) target = $region13
    $region12: #{simple_classifier_fwd.1} parent=1 // pred_region
      _
    $region13: #{simple_classifier_fwd.1} parent=1 // pred_fallthru
      _
    // Predicated region
    $region14: #{simple_classifier_fwd.1} parent=1 // pred_check
      _
    $region15: #{simple_classifier_fwd.1} parent=1 // pred_check_branch
      %37 = sbr.rel (0) target = $region17
    $region16: #{simple_classifier_fwd.1} parent=1 // pred_region
      %s39 = ssub.s32 1024, 1024
      %40 = vsyncadd [#allocation5], %s39
      %s41 = sshll.u32 [#allocation6], 4
      %s42 = int_to_ptr.vmem [resolvable:$true] %s41
      %47 = dma.hbm_to_vmem [thread:$0]  %s3, 1024, %s42, [#allocation5], 64, 64, 4
    $region17: #{simple_classifier_fwd.1} parent=1 // pred_fallthru
      _
    // Predicated region
    $region18: #{simple_classifier_fwd.1} parent=1 // pred_check
      _
    $region19: #{simple_classifier_fwd.1} parent=1 // pred_check_branch
      %49 = sbr.rel (0) target = $region21
    $region20: #{simple_classifier_fwd.1} parent=1 // pred_region
      _
    $region21: #{simple_classifier_fwd.1} parent=1 // pred_fallthru
      _
    // Predicated region
    $region22: #{simple_classifier_fwd.1} parent=1 // pred_check
      _
    $region23: #{simple_classifier_fwd.1} parent=1 // pred_check_branch
      %51 = sbr.rel (0) target = $region25
    $region24: #{simple_classifier_fwd.1} parent=1 // pred_region
      %52 = dma.done [#allocation3], 128
    $region25: #{simple_classifier_fwd.1} parent=1 // pred_fallthru
      _
    // Predicated region
    $region26: #{simple_classifier_fwd.1} parent=1 // pred_check
      _
    $region27: #{simple_classifier_fwd.1} parent=1 // pred_check_branch
      %54 = sbr.rel (0) target = $region29
    $region28: #{simple_classifier_fwd.1} parent=1 // pred_region
      %55 = dma.done [#allocation5], 256
    $region29: #{simple_classifier_fwd.1} parent=1 // pred_fallthru
      _
    // Predicated region
    $region30: #{simple_classifier_fwd.1} parent=1 // pred_check
      _
    $region31: #{simple_classifier_fwd.1} parent=1 // pred_check_branch
      %57 = sbr.rel (0) target = $region33
    $region32: #{simple_classifier_fwd.1} parent=1 // pred_region
      %58 = dma.done [#allocation5], 1024
    $region33: #{simple_classifier_fwd.1} parent=1 // pred_fallthru
      _
    %v60 = vld [vmem:[#allocation2] sm:$0xff]
    %v61 = vpack.c.bf16 %v60, %v60
    %v62 = vld [vmem:[#allocation4] sm:$0xf]
    %v63 = vld [vmem:[#allocation4 + $0x4] sm:$0xf]
    %v64 = vld [vmem:[#allocation4 + $0x8] sm:$0xf]
    %v65 = vld [vmem:[#allocation4 + $0xc] sm:$0xf]
    %v66 = vld [vmem:[%s2] sm:$0x1]
    %v68 = vlaneseq
    %v69 = vshrl.u32 %v68, 7
    %v70 = vsub.s32 0, %v69
    %v71 = vrot.slane %v66, %v70
    %v77 = vunpack.c.l.b16 %v62
    %v78 = vunpack.c.l.b16 %v63
    %v79 = vunpack.c.l.b16 %v64
    %v80 = vunpack.c.l.b16 %v65
    %v81 = vpack.c.b16 %v78, %v77
    %v82 = vpack.c.b16 %v80, %v79
    %vm85 = vcmask 261120
    %v87 = vsel %vm85, %v61, 0
    %89 = vmatprep.subr.bf16.mxu0 0
    %90 = vmatpush1.bf16.msra.mxu0 %v81
    %91 = vmatprep.subr.bf16.mxu0 0
    %92 = vmatpush1.bf16.msra.mxu0 %v82
    %93 = vmatprep.subr.bf16.mxu0 0
    %94 = vmatpush1.bf16.msra.mxu0 0
    %95 = vmatprep.subr.bf16.mxu0 0
    %96 = vmatpush1.bf16.msra.mxu0 0
    %97 = vmatprep.subr.bf16.mxu0 0
    %98 = vmatpush1.bf16.msra.mxu0 0
    %99 = vmatprep.subr.bf16.mxu0 0
    %100 = vmatpush1.bf16.msra.mxu0 0
    %101 = vmatprep.subr.bf16.mxu0 0
    %102 = vmatpush1.bf16.msra.mxu0 0
    %103 = vmatprep.subr.bf16.mxu0 0
    %104 = vmatpush1.bf16.msra.mxu0 0
    %105 = vmatprep.subr.bf16.mxu0 0
    %106 = vmatpush1.bf16.msra.mxu0 0
    %107 = vmatprep.subr.bf16.mxu0 0
    %108 = vmatpush1.bf16.msra.mxu0 0
    %109 = vmatprep.subr.bf16.mxu0 0
    %110 = vmatpush1.bf16.msra.mxu0 0
    %111 = vmatprep.subr.bf16.mxu0 0
    %112 = vmatpush1.bf16.msra.mxu0 0
    %113 = vmatprep.subr.bf16.mxu0 0
    %114 = vmatpush1.bf16.msra.mxu0 0
    %115 = vmatprep.subr.bf16.mxu0 0
    %116 = vmatpush1.bf16.msra.mxu0 0
    %117 = vmatprep.subr.bf16.mxu0 0
    %118 = vmatpush1.bf16.msra.mxu0 0
    %119 = vmatprep.subr.bf16.mxu0 0
    %120 = vmatpush1.bf16.msra.mxu0 0
    %121 = vmatprep.mubr.bf16.mxu0 0
    %122 = vmatmul.mubr.bf16.gmra.mrb[0].mxu0 %v87
    %v123 = vpop.f32.mrb[0].mxu0
    %v124 = vadd.f32 %v71, %v123
    %v125 = vpop.f32.mrb[0].mxu0
    %v126 = vpop.f32.mrb[0].mxu0
    %v127 = vpop.f32.mrb[0].mxu0
    %128 = vdwg.mxu0
    %v129 = vmax.f32 %v124, 0.0
    %v130 = vpack.c.bf16 %v129, %v129
    %v131 = vld [vmem:[#allocation6] sm:$0xf]
    %v132 = vld [vmem:[#allocation6 + $0x4] sm:$0xf]
    %v133 = vld [vmem:[#allocation6 + $0x8] sm:$0xf]
    %v134 = vld [vmem:[#allocation6 + $0xc] sm:$0xf]
    %v135 = vld [vmem:[#allocation6 + $0x10] sm:$0xf]
    %v136 = vld [vmem:[#allocation6 + $0x14] sm:$0xf]
    %v137 = vld [vmem:[#allocation6 + $0x18] sm:$0xf]
    %v138 = vld [vmem:[#allocation6 + $0x1c] sm:$0xf]
    %v139 = vld [vmem:[#allocation6 + $0x20] sm:$0xf]
    %v140 = vld [vmem:[#allocation6 + $0x24] sm:$0xf]
    %v141 = vld [vmem:[#allocation6 + $0x28] sm:$0xf]
    %v142 = vld [vmem:[#allocation6 + $0x2c] sm:$0xf]
    %v143 = vld [vmem:[#allocation6 + $0x30] sm:$0xf]
    %v144 = vld [vmem:[#allocation6 + $0x34] sm:$0xf]
    %v145 = vld [vmem:[#allocation6 + $0x38] sm:$0xf]
    %v146 = vld [vmem:[#allocation6 + $0x3c] sm:$0xf]
    %v147 = vld [vmem:[%s4] sm:$0x1]
    %v149 = vlaneseq
    %v150 = vshrl.u32 %v149, 7
    %v151 = vsub.s32 0, %v150
    %v152 = vrot.slane %v147, %v151
    %v170 = vunpack.c.l.b16 %v131
    %v171 = vunpack.c.l.b16 %v132
    %v172 = vunpack.c.l.b16 %v133
    %v173 = vunpack.c.l.b16 %v134
    %v174 = vunpack.c.l.b16 %v135
    %v175 = vunpack.c.l.b16 %v136
    %v176 = vunpack.c.l.b16 %v137
    %v177 = vunpack.c.l.b16 %v138
    %v178 = vunpack.c.l.b16 %v139
    %v179 = vunpack.c.l.b16 %v140
    %v180 = vunpack.c.l.b16 %v141
    %v181 = vunpack.c.l.b16 %v142
    %v182 = vunpack.c.l.b16 %v143
    %v183 = vunpack.c.l.b16 %v144
    %v184 = vunpack.c.l.b16 %v145
    %v185 = vunpack.c.l.b16 %v146
    %v186 = vpack.c.b16 %v171, %v170
    %v187 = vpack.c.b16 %v173, %v172
    %v188 = vpack.c.b16 %v175, %v174
    %v189 = vpack.c.b16 %v177, %v176
    %v190 = vpack.c.b16 %v179, %v178
    %v191 = vpack.c.b16 %v181, %v180
    %v192 = vpack.c.b16 %v183, %v182
    %v193 = vpack.c.b16 %v185, %v184
    %202 = vmatprep.subr.bf16.mxu0 0
    %203 = vmatpush1.bf16.msra.mxu0 %v186
    %204 = vmatprep.subr.bf16.mxu0 0
    %205 = vmatpush1.bf16.msra.mxu0 %v187
    %206 = vmatprep.subr.bf16.mxu0 0
    %207 = vmatpush1.bf16.msra.mxu0 %v188
    %208 = vmatprep.subr.bf16.mxu0 0
    %209 = vmatpush1.bf16.msra.mxu0 %v189
    %210 = vmatprep.subr.bf16.mxu0 0
    %211 = vmatpush1.bf16.msra.mxu0 %v190
    %212 = vmatprep.subr.bf16.mxu0 0
    %213 = vmatpush1.bf16.msra.mxu0 %v191
    %214 = vmatprep.subr.bf16.mxu0 0
    %215 = vmatpush1.bf16.msra.mxu0 %v192
    %216 = vmatprep.subr.bf16.mxu0 0
    %217 = vmatpush1.bf16.msra.mxu0 %v193
    %218 = vmatprep.subr.bf16.mxu0 0
    %219 = vmatpush1.bf16.msra.mxu0 0
    %220 = vmatprep.subr.bf16.mxu0 0
    %221 = vmatpush1.bf16.msra.mxu0 0
    %222 = vmatprep.subr.bf16.mxu0 0
    %223 = vmatpush1.bf16.msra.mxu0 0
    %224 = vmatprep.subr.bf16.mxu0 0
    %225 = vmatpush1.bf16.msra.mxu0 0
    %226 = vmatprep.subr.bf16.mxu0 0
    %227 = vmatpush1.bf16.msra.mxu0 0
    %228 = vmatprep.subr.bf16.mxu0 0
    %229 = vmatpush1.bf16.msra.mxu0 0
    %230 = vmatprep.subr.bf16.mxu0 0
    %231 = vmatpush1.bf16.msra.mxu0 0
    %232 = vmatprep.subr.bf16.mxu0 0
    %233 = vmatpush1.bf16.msra.mxu0 0
    %234 = vmatprep.mubr.bf16.mxu0 0
    %235 = vmatmul.mubr.bf16.gmra.mrb[0].mxu0 %v130
    %v236 = vpop.f32.mrb[0].mxu0
    %v237 = vadd.f32 %v152, %v236
    %v238 = vpop.f32.mrb[0].mxu0
    %v239 = vpop.f32.mrb[0].mxu0
    %v240 = vpop.f32.mrb[0].mxu0
    %241 = vdwg.mxu0
    %v242 = vpack.c.bf16 %v237, %v237
    %243 = vst [vmem:[%s5] sm:$0xf] %v242
    // Predicated region
    $region34: #{simple_classifier_fwd.1} parent=1 // pred_check
      _
    $region35: #{simple_classifier_fwd.1} parent=1 // pred_check_branch
      %245 = sbr.rel (0) target = $region37
    $region36: #{simple_classifier_fwd.1} parent=1 // pred_region
      _
    $region37: #{simple_classifier_fwd.1} parent=1 // pred_fallthru
      _
    // Predicated region
    $region38: #{simple_classifier_fwd.1} parent=1 // pred_check
      _
    $region39: #{simple_classifier_fwd.1} parent=1 // pred_check_branch
      %247 = sbr.rel (0) target = $region41
    $region40: #{simple_classifier_fwd.1} parent=1 // pred_region
      _
    $region41: #{simple_classifier_fwd.1} parent=1 // pred_fallthru
      _
    %248 = vsyncpa [#allocation3], 1
    %249 = vsyncpa [#allocation5], 1

</llo_original>
